<compile_context>
chip_gen: v7x
topology: tpu7x:2x2x1
jax: 0.10.0
libtpu: 0.0.40
codegen_flags: <defaults>
</compile_context>

<pallas_src>
import jax
import jax.numpy as jnp
from jax.experimental import pallas as pl
from jax.experimental.pallas import tpu as pltpu


# ---------------------------------------------------------------------------
# Kernel
# ---------------------------------------------------------------------------
def _mlp_kernel(x_ref,
                w1_ref, b1_ref,
                w2_ref, b2_ref,
                w3_ref, b3_ref,
                w4_ref, b4_ref,
                o_ref):
    """Whole-MLP forward on one (TB, E) batch tile resident in VMEM.

    Weights are bf16, activations f32; matmul inputs are cast to bf16 and
    accumulated in f32 on the MXU.  Dropout layers are identity (eval mode).
    """
    h = x_ref[...].astype(jnp.bfloat16)

    # Layer 1: Linear(E, 512) + ReLU   (Dropout -> identity in eval mode)
    h = jnp.dot(h, w1_ref[...], preferred_element_type=jnp.float32) + b1_ref[...]
    h = jnp.maximum(h, 0.0)

    # Layer 2: Linear(512, 256) + ReLU  (Dropout -> identity in eval mode)
    h = jnp.dot(h.astype(jnp.bfloat16), w2_ref[...],
                preferred_element_type=jnp.float32) + b2_ref[...]
    h = jnp.maximum(h, 0.0)

    # Layer 3: Linear(256, 64) + ReLU
    h = jnp.dot(h.astype(jnp.bfloat16), w3_ref[...],
                preferred_element_type=jnp.float32) + b3_ref[...]
    h = jnp.maximum(h, 0.0)

    # Layer 4: Linear(64, output_size)
    out = jnp.dot(h.astype(jnp.bfloat16), w4_ref[...],
                  preferred_element_type=jnp.float32) + b4_ref[...]

    o_ref[...] = out.astype(o_ref.dtype)


# ---------------------------------------------------------------------------
# Wrapper
# ---------------------------------------------------------------------------
def _round_up(n, m):
    return (n + m - 1) // m * m


def _cdiv(a, b):
    return -(-a // b)


def _x_index_map(i):
    return (i, 0)


def _const_index_map(i):
    return (0, 0)


def _choose_batch_tile(B, block_batch):
    """Largest batch tile <= block_batch that keeps row-padding waste < 1 tile
    and gives >= 2 grid steps once the batch is big enough (v7x megacore)."""
    block_batch = max(8, _round_up(block_batch, 8))
    min_tiles = 2 if B >= 256 else 1
    n_tiles = max(min_tiles, _cdiv(B, block_batch))
    tb = _round_up(_cdiv(B, n_tiles), 8)
    return max(8, min(tb, block_batch))


def contact_distribution_forward(x, params, *, block_batch=1024):
    """MLP forward with a single pallas_call over a batch grid.

    x      : (B, inp_emb_size) float32 or bfloat16
    params : parameter dict from prepare_params()
    """
    B, E = x.shape
    out_size = params["w4"].shape[1]

    TB = _choose_batch_tile(B, block_batch)
    Bp = _round_up(B, TB)

    # Only row padding (so the grid divides evenly); no lane padding of E.
    x_p = x if Bp == B else jnp.pad(x, ((0, Bp - B), (0, 0)))

    weight_args = (params["w1"], params["b1"],
                   params["w2"], params["b2"],
                   params["w3"], params["b3"],
                   params["w4"], params["b4"])

    in_specs = [pl.BlockSpec((TB, E), _x_index_map)]
    # Weights / biases: one full-array block with a constant index -> fetched
    # once and revisited (no re-DMA) for every batch tile.  Single-buffered:
    # a constant block never needs the second pipeline buffer.
    for a in weight_args:
        in_specs.append(
            pl.BlockSpec(a.shape, _const_index_map,
                         pipeline_mode=pl.Buffered(1)))

    out = pl.pallas_call(
        _mlp_kernel,
        grid=(Bp // TB,),
        in_specs=in_specs,
        out_specs=pl.BlockSpec((TB, out_size), _x_index_map),
        out_shape=jax.ShapeDtypeStruct((Bp, out_size), jnp.float32),
        compiler_params=pltpu.CompilerParams(
            dimension_semantics=("parallel",)),   # megacore split on v7x
    )(x_p, *weight_args)

    return out if Bp == B else out[:B]


# ---------------------------------------------------------------------------
# Parameters
# ---------------------------------------------------------------------------
def init_params(key, inp_emb_size, output_size):
    """Raw f32 params with PyTorch nn.Linear-like init, stored as (in, out)."""
    sizes = [(inp_emb_size, 512), (512, 256), (256, 64), (64, output_size)]
    params = {}
    for i, (fan_in, fan_out) in enumerate(sizes, start=1):
        key, kw, kb = jax.random.split(key, 3)
        bound = 1.0 / jnp.sqrt(fan_in)
        params[f"w{i}"] = jax.random.uniform(
            kw, (fan_in, fan_out), jnp.float32, -bound, bound)
        params[f"b{i}"] = jax.random.uniform(
            kb, (1, fan_out), jnp.float32, -bound, bound)
    return params


def prepare_params(raw):
    """Cast weights to bf16 (MXU path, half the weight bytes); biases stay f32.

    No lane padding: all shapes are kept natural and the kernel uses
    full-extent blocks for every parameter.
    """
    out = {}
    for i in range(1, 5):
        out[f"w{i}"] = raw[f"w{i}"].astype(jnp.bfloat16)
        out[f"b{i}"] = raw[f"b{i}"].astype(jnp.float32)
    return out


def reference_forward(x, raw):
    """Plain-JAX reference mirroring the kernel's bf16-weight / f32-accum math."""
    def lin(h, w, b):
        return jnp.dot(h.astype(jnp.bfloat16), w.astype(jnp.bfloat16),
                       preferred_element_type=jnp.float32) + b
    h = jnp.maximum(lin(x, raw["w1"], raw["b1"]), 0.0)
    h = jnp.maximum(lin(h, raw["w2"], raw["b2"]), 0.0)
    h = jnp.maximum(lin(h, raw["w3"], raw["b3"]), 0.0)
    return lin(h, raw["w4"], raw["b4"])


# ---------------------------------------------------------------------------
if __name__ == "__main__":
    key = jax.random.PRNGKey(0)

    batch = 8
    inp_emb_size = 32
    output_size = 16

    key, kx = jax.random.split(key)
    x = jax.random.normal(kx, (batch, inp_emb_size), jnp.float32)

    raw = init_params(key, inp_emb_size, output_size)
    params = prepare_params(raw)

    out = contact_distribution_forward(x, params)
    out = jax.block_until_ready(out)

    ref = reference_forward(x, raw)
    assert out.shape == (batch, output_size)
    assert jnp.allclose(out, ref, atol=2e-2, rtol=2e-2), "mismatch vs reference"

    print("KERNEL_OK")
</pallas_src>

<mosaic_0001>
module attributes {stable_mosaic.version = 11 : i64} {
  func.func @_mlp_kernel(%arg0: i32, %arg1: memref<8x32xf32, #tpu.memory_space<vmem>>, %arg2: memref<32x512xbf16, #tpu.memory_space<vmem>>, %arg3: memref<1x512xf32, #tpu.memory_space<vmem>>, %arg4: memref<512x256xbf16, #tpu.memory_space<vmem>>, %arg5: memref<1x256xf32, #tpu.memory_space<vmem>>, %arg6: memref<256x64xbf16, #tpu.memory_space<vmem>>, %arg7: memref<1x64xf32, #tpu.memory_space<vmem>>, %arg8: memref<64x16xbf16, #tpu.memory_space<vmem>>, %arg9: memref<1x16xf32, #tpu.memory_space<vmem>>, %arg10: memref<8x16xf32, #tpu.memory_space<vmem>>) attributes {dimension_semantics = [#tpu.dimension_semantics<parallel>], iteration_bounds = array<i64: 1>, scalar_prefetch = 0 : i64, scratch_operands = 0 : i64, tpu.core_type = #tpu.core_type<tc>, window_params = [{transform_indices = @transform_0, window_bounds = array<i64: 8, 32>}, {pipeline_mode = #tpu.pipeline_mode<synchronous>, transform_indices = @transform_1, window_bounds = array<i64: 32, 512>}, {pipeline_mode = #tpu.pipeline_mode<synchronous>, transform_indices = @transform_2, window_bounds = array<i64: 1, 512>}, {pipeline_mode = #tpu.pipeline_mode<synchronous>, transform_indices = @transform_3, window_bounds = array<i64: 512, 256>}, {pipeline_mode = #tpu.pipeline_mode<synchronous>, transform_indices = @transform_4, window_bounds = array<i64: 1, 256>}, {pipeline_mode = #tpu.pipeline_mode<synchronous>, transform_indices = @transform_5, window_bounds = array<i64: 256, 64>}, {pipeline_mode = #tpu.pipeline_mode<synchronous>, transform_indices = @transform_6, window_bounds = array<i64: 1, 64>}, {pipeline_mode = #tpu.pipeline_mode<synchronous>, transform_indices = @transform_7, window_bounds = array<i64: 64, 16>}, {pipeline_mode = #tpu.pipeline_mode<synchronous>, transform_indices = @transform_8, window_bounds = array<i64: 1, 16>}, {transform_indices = @transform_9, window_bounds = array<i64: 8, 16>}]} {
    %c0 = arith.constant 0 : index
    %c0_0 = arith.constant 0 : index
    %0 = vector.load %arg1[%c0, %c0_0] : memref<8x32xf32, #tpu.memory_space<vmem>>, vector<8x32xf32>
    %1 = arith.truncf %0 : vector<8x32xf32> to vector<8x32xbf16>
    %c0_1 = arith.constant 0 : index
    %c0_2 = arith.constant 0 : index
    %2 = vector.load %arg2[%c0_1, %c0_2] : memref<32x512xbf16, #tpu.memory_space<vmem>>, vector<32x512xbf16>
    %cst = arith.constant dense<0.000000e+00> : vector<8x512xf32>
    %3 = tpu.matmul %1, %2, %cst {dimension_numbers = #tpu.dot_dimension_numbers<[1], [0], [0], [1], [0, 0, 1, 1], [], []>} : vector<8x32xbf16>, vector<32x512xbf16>, vector<8x512xf32> -> vector<8x512xf32>
    %c0_3 = arith.constant 0 : index
    %c0_4 = arith.constant 0 : index
    %4 = vector.load %arg3[%c0_3, %c0_4] : memref<1x512xf32, #tpu.memory_space<vmem>>, vector<1x512xf32>
    %5 = vector.broadcast %4 : vector<1x512xf32> to vector<8x512xf32>
    %6 = arith.addf %3, %5 : vector<8x512xf32>
    %cst_5 = arith.constant 0.000000e+00 : f32
    %7 = vector.broadcast %cst_5 : f32 to vector<8x512xf32>
    %8 = arith.maximumf %6, %7 : vector<8x512xf32>
    %9 = arith.truncf %8 : vector<8x512xf32> to vector<8x512xbf16>
    %c0_6 = arith.constant 0 : index
    %c0_7 = arith.constant 0 : index
    %10 = vector.load %arg4[%c0_6, %c0_7] : memref<512x256xbf16, #tpu.memory_space<vmem>>, vector<512x256xbf16>
    %cst_8 = arith.constant dense<0.000000e+00> : vector<8x256xf32>
    %11 = tpu.matmul %9, %10, %cst_8 {dimension_numbers = #tpu.dot_dimension_numbers<[1], [0], [0], [1], [0, 0, 1, 1], [], []>} : vector<8x512xbf16>, vector<512x256xbf16>, vector<8x256xf32> -> vector<8x256xf32>
    %c0_9 = arith.constant 0 : index
    %c0_10 = arith.constant 0 : index
    %12 = vector.load %arg5[%c0_9, %c0_10] : memref<1x256xf32, #tpu.memory_space<vmem>>, vector<1x256xf32>
    %13 = vector.broadcast %12 : vector<1x256xf32> to vector<8x256xf32>
    %14 = arith.addf %11, %13 : vector<8x256xf32>
    %cst_11 = arith.constant 0.000000e+00 : f32
    %15 = vector.broadcast %cst_11 : f32 to vector<8x256xf32>
    %16 = arith.maximumf %14, %15 : vector<8x256xf32>
    %17 = arith.truncf %16 : vector<8x256xf32> to vector<8x256xbf16>
    %c0_12 = arith.constant 0 : index
    %c0_13 = arith.constant 0 : index
    %18 = vector.load %arg6[%c0_12, %c0_13] : memref<256x64xbf16, #tpu.memory_space<vmem>>, vector<256x64xbf16>
    %cst_14 = arith.constant dense<0.000000e+00> : vector<8x64xf32>
    %19 = tpu.matmul %17, %18, %cst_14 {dimension_numbers = #tpu.dot_dimension_numbers<[1], [0], [0], [1], [0, 0, 1, 1], [], []>} : vector<8x256xbf16>, vector<256x64xbf16>, vector<8x64xf32> -> vector<8x64xf32>
    %c0_15 = arith.constant 0 : index
    %c0_16 = arith.constant 0 : index
    %20 = vector.load %arg7[%c0_15, %c0_16] : memref<1x64xf32, #tpu.memory_space<vmem>>, vector<1x64xf32>
    %21 = vector.broadcast %20 : vector<1x64xf32> to vector<8x64xf32>
    %22 = arith.addf %19, %21 : vector<8x64xf32>
    %cst_17 = arith.constant 0.000000e+00 : f32
    %23 = vector.broadcast %cst_17 : f32 to vector<8x64xf32>
    %24 = arith.maximumf %22, %23 : vector<8x64xf32>
    %25 = arith.truncf %24 : vector<8x64xf32> to vector<8x64xbf16>
    %c0_18 = arith.constant 0 : index
    %c0_19 = arith.constant 0 : index
    %26 = vector.load %arg8[%c0_18, %c0_19] : memref<64x16xbf16, #tpu.memory_space<vmem>>, vector<64x16xbf16>
    %cst_20 = arith.constant dense<0.000000e+00> : vector<8x16xf32>
    %27 = tpu.matmul %25, %26, %cst_20 {dimension_numbers = #tpu.dot_dimension_numbers<[1], [0], [0], [1], [0, 0, 1, 1], [], []>} : vector<8x64xbf16>, vector<64x16xbf16>, vector<8x16xf32> -> vector<8x16xf32>
    %c0_21 = arith.constant 0 : index
    %c0_22 = arith.constant 0 : index
    %28 = vector.load %arg9[%c0_21, %c0_22] : memref<1x16xf32, #tpu.memory_space<vmem>>, vector<1x16xf32>
    %29 = vector.broadcast %28 : vector<1x16xf32> to vector<8x16xf32>
    %30 = arith.addf %27, %29 : vector<8x16xf32>
    %c0_23 = arith.constant 0 : index
    %c0_24 = arith.constant 0 : index
    %31 = vector.load %arg10[%c0_23, %c0_24] : memref<8x16xf32, #tpu.memory_space<vmem>>, vector<8x16xf32>
    tpu.vector_store %arg10[%c0_23, %c0_24], %30 {strides = array<i32>} : memref<8x16xf32, #tpu.memory_space<vmem>>, vector<8x16xf32>,
    return
  }
  func.func @transform_0(%arg0: i32) -> (i32, i32) {
    %c0_i32 = arith.constant 0 : i32
    %c0_i32_0 = arith.constant 0 : i32
    return %arg0, %c0_i32 : i32, i32
  }
  func.func @transform_1(%arg0: i32) -> (i32, i32) {
    %c0_i32 = arith.constant 0 : i32
    %c0_i32_0 = arith.constant 0 : i32
    %c0_i32_1 = arith.constant 0 : i32
    return %c0_i32, %c0_i32_0 : i32, i32
  }
  func.func @transform_2(%arg0: i32) -> (i32, i32) {
    %c0_i32 = arith.constant 0 : i32
    %c0_i32_0 = arith.constant 0 : i32
    %c0_i32_1 = arith.constant 0 : i32
    return %c0_i32, %c0_i32_0 : i32, i32
  }
  func.func @transform_3(%arg0: i32) -> (i32, i32) {
    %c0_i32 = arith.constant 0 : i32
    %c0_i32_0 = arith.constant 0 : i32
    %c0_i32_1 = arith.constant 0 : i32
    return %c0_i32, %c0_i32_0 : i32, i32
  }
  func.func @transform_4(%arg0: i32) -> (i32, i32) {
    %c0_i32 = arith.constant 0 : i32
    %c0_i32_0 = arith.constant 0 : i32
    %c0_i32_1 = arith.constant 0 : i32
    return %c0_i32, %c0_i32_0 : i32, i32
  }
  func.func @transform_5(%arg0: i32) -> (i32, i32) {
    %c0_i32 = arith.constant 0 : i32
    %c0_i32_0 = arith.constant 0 : i32
    %c0_i32_1 = arith.constant 0 : i32
    return %c0_i32, %c0_i32_0 : i32, i32
  }
  func.func @transform_6(%arg0: i32) -> (i32, i32) {
    %c0_i32 = arith.constant 0 : i32
    %c0_i32_0 = arith.constant 0 : i32
    %c0_i32_1 = arith.constant 0 : i32
    return %c0_i32, %c0_i32_0 : i32, i32
  }
  func.func @transform_7(%arg0: i32) -> (i32, i32) {
    %c0_i32 = arith.constant 0 : i32
    %c0_i32_0 = arith.constant 0 : i32
    %c0_i32_1 = arith.constant 0 : i32
    return %c0_i32, %c0_i32_0 : i32, i32
  }
  func.func @transform_8(%arg0: i32) -> (i32, i32) {
    %c0_i32 = arith.constant 0 : i32
    %c0_i32_0 = arith.constant 0 : i32
    %c0_i32_1 = arith.constant 0 : i32
    return %c0_i32, %c0_i32_0 : i32, i32
  }
  func.func @transform_9(%arg0: i32) -> (i32, i32) {
    %c0_i32 = arith.constant 0 : i32
    %c0_i32_0 = arith.constant 0 : i32
    return %arg0, %c0_i32 : i32, i32
  }
}

</mosaic_0001>

<llo_original>
// kernel: tpu_custom_call.1
$region0: #{tpu_custom_call.1}
  #allocation0 [shape = 'u32[]', space=smem, size = 0x4, offset = 0x4, fixed_abs, tag = 'smem constant byte address 0x4 - core index']
  #allocation1 [shape = 'u32[144,128]{1,0:T(1,128)}', space=vmem, size = 0x12000, scoped, tag = 'internal scratch']
  %s0 = inlined_call_operand.vmem [shape: f32[8,32], index: 0, kind: input, shape index: {}]
  %s1 = inlined_call_operand.vmem [shape: bf16[32,512], index: 1, kind: input, shape index: {}]
  %s2 = inlined_call_operand.vmem [shape: f32[1,512], index: 2, kind: input, shape index: {}]
  %s3 = inlined_call_operand.hbm [shape: bf16[512,256], index: 3, kind: input, shape index: {}]
  %s4 = inlined_call_operand.vmem [shape: f32[1,256], index: 4, kind: input, shape index: {}]
  %s5 = inlined_call_operand.vmem [shape: bf16[256,64], index: 5, kind: input, shape index: {}]
  %s6 = inlined_call_operand.vmem [shape: f32[1,64], index: 6, kind: input, shape index: {}]
  %s7 = inlined_call_operand.vmem [shape: bf16[64,16], index: 7, kind: input, shape index: {}]
  %s8 = inlined_call_operand.vmem [shape: f32[1,16], index: 8, kind: input, shape index: {}]
  %s9 = inlined_call_operand.hbm [shape: f32[8,16], index: 9, kind: output, shape index: {}]
  %s10 = sld [smem:[#allocation0]]
  $region50: #{tpu_custom_call.1} parent=0
    _
  %s12 = ssub.s32 1, %s10
  %s13 = scalar_select 0, %s12, %s10
  $region1: #{tpu_custom_call.1} parent=0
    #allocation2 [shape = 'u8[262144]{0}', space=vmem, size = 0x40000, scoped, tag = 'input window, operand 3, single buffered']
    #allocation3 [shape = 's32[1]{0}', space=sflag, size = 0x4, scoped, tag = 'scoped memory for tpu_custom_call.1']
    #allocation4 [shape = 's32[1]{0}', space=sflag, size = 0x4, scoped, tag = 'scoped memory for tpu_custom_call.1']
    #allocation5 [shape = 'u8[4096]{0}', space=vmem, size = 0x1000, scoped, tag = 'output window, operand 0, single buffered']
    %14 = vsyncpa [#allocation3], 0
    %15 = vsyncpa [#allocation4], 0
    // Predicated region
    $region2: #{tpu_custom_call.1} parent=1 // pred_check
      _
    $region3: #{tpu_custom_call.1} parent=1 // pred_check_branch
      %17 = sbr.rel (0) target = $region5
    $region4: #{tpu_custom_call.1} parent=1 // pred_region
      _
    $region5: #{tpu_custom_call.1} parent=1 // pred_fallthru
      _
    // Predicated region
    $region6: #{tpu_custom_call.1} parent=1 // pred_check
      _
    $region7: #{tpu_custom_call.1} parent=1 // pred_check_branch
      %19 = sbr.rel (0) target = $region9
    $region8: #{tpu_custom_call.1} parent=1 // pred_region
      _
    $region9: #{tpu_custom_call.1} parent=1 // pred_fallthru
      _
    // Predicated region
    $region10: #{tpu_custom_call.1} parent=1 // pred_check
      _
    $region11: #{tpu_custom_call.1} parent=1 // pred_check_branch
      %21 = sbr.rel (0) target = $region13
    $region12: #{tpu_custom_call.1} parent=1 // pred_region
      _
    $region13: #{tpu_custom_call.1} parent=1 // pred_fallthru
      _
    // Predicated region
    $region14: #{tpu_custom_call.1} parent=1 // pred_check
      _
    $region15: #{tpu_custom_call.1} parent=1 // pred_check_branch
      %23 = sbr.rel (0) target = $region17
    $region16: #{tpu_custom_call.1} parent=1 // pred_region
      %s25 = ssub.s32 8192, 8192
      %26 = vsyncadd [#allocation3], %s25
      %s27 = sshll.u32 [#allocation2], 4
      %s28 = int_to_ptr.vmem [resolvable:$true] %s27
      %33 = dma.hbm_to_vmem [thread:$0]  %s3, 8192, %s28, [#allocation3], 128, 128, 8
    $region17: #{tpu_custom_call.1} parent=1 // pred_fallthru
      _
    // Predicated region
    $region18: #{tpu_custom_call.1} parent=1 // pred_check
      _
    $region19: #{tpu_custom_call.1} parent=1 // pred_check_branch
      %35 = sbr.rel (0) target = $region21
    $region20: #{tpu_custom_call.1} parent=1 // pred_region
      _
    $region21: #{tpu_custom_call.1} parent=1 // pred_fallthru
      _
    // Predicated region
    $region22: #{tpu_custom_call.1} parent=1 // pred_check
      _
    $region23: #{tpu_custom_call.1} parent=1 // pred_check_branch
      %37 = sbr.rel (0) target = $region25
    $region24: #{tpu_custom_call.1} parent=1 // pred_region
      _
    $region25: #{tpu_custom_call.1} parent=1 // pred_fallthru
      _
    // Predicated region
    $region26: #{tpu_custom_call.1} parent=1 // pred_check
      _
    $region27: #{tpu_custom_call.1} parent=1 // pred_check_branch
      %39 = sbr.rel (0) target = $region29
    $region28: #{tpu_custom_call.1} parent=1 // pred_region
      _
    $region29: #{tpu_custom_call.1} parent=1 // pred_fallthru
      _
    // Predicated region
    $region30: #{tpu_custom_call.1} parent=1 // pred_check
      _
    $region31: #{tpu_custom_call.1} parent=1 // pred_check_branch
      %41 = sbr.rel (0) target = $region33
    $region32: #{tpu_custom_call.1} parent=1 // pred_region
      _
    $region33: #{tpu_custom_call.1} parent=1 // pred_fallthru
      _
    // Predicated region
    $region34: #{tpu_custom_call.1} parent=1 // pred_check
      _
    $region35: #{tpu_custom_call.1} parent=1 // pred_check_branch
      %43 = sbr.rel (0) target = $region37
    $region36: #{tpu_custom_call.1} parent=1 // pred_region
      _
    $region37: #{tpu_custom_call.1} parent=1 // pred_fallthru
      _
    // Predicated region
    $region38: #{tpu_custom_call.1} parent=1 // pred_check
      _
    $region39: #{tpu_custom_call.1} parent=1 // pred_check_branch
      %45 = sbr.rel (0) target = $region41
    $region40: #{tpu_custom_call.1} parent=1 // pred_region
      %46 = dma.done [#allocation3], 8192
    $region41: #{tpu_custom_call.1} parent=1 // pred_fallthru
      _
    %v48 = vld [vmem:[%s0] sm:$0xff]
    %v49 = vpack.c.bf16 %v48, %v48
    %v50 = vld [vmem:[%s1] sm:$0xff]
    %v51 = vld [vmem:[%s1 + $0x8] sm:$0xff]
    %v52 = vld [vmem:[%s1 + $0x10] sm:$0xff]
    %v53 = vld [vmem:[%s1 + $0x18] sm:$0xff]
    %v54 = vld [vmem:[%s1 + $0x20] sm:$0xff]
    %v55 = vld [vmem:[%s1 + $0x28] sm:$0xff]
    %v56 = vld [vmem:[%s1 + $0x30] sm:$0xff]
    %v57 = vld [vmem:[%s1 + $0x38] sm:$0xff]
    %v58 = vld [vmem:[%s2] sm:$0xf]
    %v60 = vlaneseq
    %v61 = vshrl.u32 %v60, 7
    %v62 = vsub.s32 0, %v61
    %v63 = vrot.slane %v58, %v62
    %v64 = vlaneseq
    %v65 = vshrl.u32 %v64, 7
    %v66 = vsub.s32 1, %v65
    %v67 = vrot.slane %v58, %v66
    %v68 = vlaneseq
    %v69 = vshrl.u32 %v68, 7
    %v70 = vsub.s32 2, %v69
    %v71 = vrot.slane %v58, %v70
    %v72 = vlaneseq
    %v73 = vshrl.u32 %v72, 7
    %v74 = vsub.s32 3, %v73
    %v75 = vrot.slane %v58, %v74
    %v88 = vunpack.c.l.b16 %v50
    %v89 = vunpack.c.h.b16 %v50
    %v90 = vunpack.c.l.b16 %v51
    %v91 = vunpack.c.h.b16 %v51
    %v92 = vunpack.c.l.b16 %v52
    %v93 = vunpack.c.h.b16 %v52
    %v94 = vunpack.c.l.b16 %v53
    %v95 = vunpack.c.h.b16 %v53
    %v96 = vunpack.c.l.b16 %v54
    %v97 = vunpack.c.h.b16 %v54
    %v98 = vunpack.c.l.b16 %v55
    %v99 = vunpack.c.h.b16 %v55
    %v100 = vunpack.c.l.b16 %v56
    %v101 = vunpack.c.h.b16 %v56
    %v102 = vunpack.c.l.b16 %v57
    %v103 = vunpack.c.h.b16 %v57
    %v104 = vpack.c.b16 %v92, %v88
    %v105 = vpack.c.b16 %v93, %v89
    %v106 = vpack.c.b16 %v94, %v90
    %v107 = vpack.c.b16 %v95, %v91
    %v108 = vpack.c.b16 %v100, %v96
    %v109 = vpack.c.b16 %v101, %v97
    %v110 = vpack.c.b16 %v102, %v98
    %v111 = vpack.c.b16 %v103, %v99
    %vm120 = vcmask 261120
    %v122 = vsel %vm120, %v49, 0
    %124 = vmatprep.subr.bf16.mxu0 %v105
    %125 = vmatpush1.bf16.msra.mxu0 %v104
    %126 = vmatprep.subr.bf16.mxu0 %v109
    %127 = vmatpush1.bf16.msra.mxu0 %v108
    %128 = vmatprep.subr.bf16.mxu0 0
    %129 = vmatpush1.bf16.msra.mxu0 0
    %130 = vmatprep.subr.bf16.mxu0 0
    %131 = vmatpush1.bf16.msra.mxu0 0
    %132 = vmatprep.subr.bf16.mxu0 0
    %133 = vmatpush1.bf16.msra.mxu0 0
    %134 = vmatprep.subr.bf16.mxu0 0
    %135 = vmatpush1.bf16.msra.mxu0 0
    %136 = vmatprep.subr.bf16.mxu0 0
    %137 = vmatpush1.bf16.msra.mxu0 0
    %138 = vmatprep.subr.bf16.mxu0 0
    %139 = vmatpush1.bf16.msra.mxu0 0
    %140 = vmatprep.subr.bf16.mxu0 0
    %141 = vmatpush1.bf16.msra.mxu0 0
    %142 = vmatprep.subr.bf16.mxu0 0
    %143 = vmatpush1.bf16.msra.mxu0 0
    %144 = vmatprep.subr.bf16.mxu0 0
    %145 = vmatpush1.bf16.msra.mxu0 0
    %146 = vmatprep.subr.bf16.mxu0 0
    %147 = vmatpush1.bf16.msra.mxu0 0
    %148 = vmatprep.subr.bf16.mxu0 0
    %149 = vmatpush1.bf16.msra.mxu0 0
    %150 = vmatprep.subr.bf16.mxu0 0
    %151 = vmatpush1.bf16.msra.mxu0 0
    %152 = vmatprep.subr.bf16.mxu0 0
    %153 = vmatpush1.bf16.msra.mxu0 0
    %154 = vmatprep.subr.bf16.mxu0 0
    %155 = vmatpush1.bf16.msra.mxu0 0
    %156 = vmatprep.mubr.bf16.mxu0 0
    %157 = vmatmul.mubr.bf16.gmra.mrb[0].mxu0 %v122
    %v158 = vpop.f32.mrb[0].mxu0
    %v159 = vadd.f32 %v63, %v158
    %v160 = vpop.f32.mrb[0].mxu0
    %v161 = vadd.f32 %v67, %v160
    %v162 = vpop.f32.mrb[0].mxu0
    %v163 = vpop.f32.mrb[0].mxu0
    %164 = vdwg.mxu0
    %165 = vmatprep.subr.bf16.mxu0 %v107
    %166 = vmatpush1.bf16.msra.mxu0 %v106
    %167 = vmatprep.subr.bf16.mxu0 %v111
    %168 = vmatpush1.bf16.msra.mxu0 %v110
    %169 = vmatprep.subr.bf16.mxu0 0
    %170 = vmatpush1.bf16.msra.mxu0 0
    %171 = vmatprep.subr.bf16.mxu0 0
    %172 = vmatpush1.bf16.msra.mxu0 0
    %173 = vmatprep.subr.bf16.mxu0 0
    %174 = vmatpush1.bf16.msra.mxu0 0
    %175 = vmatprep.subr.bf16.mxu0 0
    %176 = vmatpush1.bf16.msra.mxu0 0
    %177 = vmatprep.subr.bf16.mxu0 0
    %178 = vmatpush1.bf16.msra.mxu0 0
    %179 = vmatprep.subr.bf16.mxu0 0
    %180 = vmatpush1.bf16.msra.mxu0 0
    %181 = vmatprep.subr.bf16.mxu0 0
    %182 = vmatpush1.bf16.msra.mxu0 0
    %183 = vmatprep.subr.bf16.mxu0 0
    %184 = vmatpush1.bf16.msra.mxu0 0
    %185 = vmatprep.subr.bf16.mxu0 0
    %186 = vmatpush1.bf16.msra.mxu0 0
    %187 = vmatprep.subr.bf16.mxu0 0
    %188 = vmatpush1.bf16.msra.mxu0 0
    %189 = vmatprep.subr.bf16.mxu0 0
    %190 = vmatpush1.bf16.msra.mxu0 0
    %191 = vmatprep.subr.bf16.mxu0 0
    %192 = vmatpush1.bf16.msra.mxu0 0
    %193 = vmatprep.subr.bf16.mxu0 0
    %194 = vmatpush1.bf16.msra.mxu0 0
    %195 = vmatprep.subr.bf16.mxu0 0
    %196 = vmatpush1.bf16.msra.mxu0 0
    %197 = vmatprep.mubr.bf16.mxu0 0
    %198 = vmatmul.mubr.bf16.gmra.mrb[0].mxu0 %v122
    %v199 = vpop.f32.mrb[0].mxu0
    %v200 = vadd.f32 %v71, %v199
    %v201 = vpop.f32.mrb[0].mxu0
    %v202 = vadd.f32 %v75, %v201
    %v203 = vpop.f32.mrb[0].mxu0
    %v204 = vpop.f32.mrb[0].mxu0
    %205 = vdwg.mxu0
    %v206 = vmax.f32 %v159, 0.0
    %v207 = vmax.f32 %v161, 0.0
    %v208 = vmax.f32 %v200, 0.0
    %v209 = vmax.f32 %v202, 0.0
    %v210 = vpack.c.bf16 %v206, %v206
    %v211 = vpack.c.bf16 %v207, %v207
    %v212 = vpack.c.bf16 %v208, %v208
    %v213 = vpack.c.bf16 %v209, %v209
    %v214 = vld [vmem:[#allocation2] sm:$0xff]
    %v215 = vld [vmem:[#allocation2 + $0x8] sm:$0xff]
    %v216 = vld [vmem:[#allocation2 + $0x10] sm:$0xff]
    %v217 = vld [vmem:[#allocation2 + $0x18] sm:$0xff]
    %v218 = vld [vmem:[#allocation2 + $0x20] sm:$0xff]
    %v219 = vld [vmem:[#allocation2 + $0x28] sm:$0xff]
    %v220 = vld [vmem:[#allocation2 + $0x30] sm:$0xff]
    %v221 = vld [vmem:[#allocation2 + $0x38] sm:$0xff]
    %v222 = vld [vmem:[#allocation2 + $0x40] sm:$0xff]
    %v223 = vld [vmem:[#allocation2 + $0x48] sm:$0xff]
    %v224 = vld [vmem:[#allocation2 + $0x50] sm:$0xff]
    %v225 = vld [vmem:[#allocation2 + $0x58] sm:$0xff]
    %v226 = vld [vmem:[#allocation2 + $0x60] sm:$0xff]
    %v227 = vld [vmem:[#allocation2 + $0x68] sm:$0xff]
    %v228 = vld [vmem:[#allocation2 + $0x70] sm:$0xff]
    %v229 = vld [vmem:[#allocation2 + $0x78] sm:$0xff]
    %v230 = vld [vmem:[#allocation2 + $0x80] sm:$0xff]
    %v231 = vld [vmem:[#allocation2 + $0x88] sm:$0xff]
    %v232 = vld [vmem:[#allocation2 + $0x90] sm:$0xff]
    %v233 = vld [vmem:[#allocation2 + $0x98] sm:$0xff]
    %v234 = vld [vmem:[#allocation2 + $0xa0] sm:$0xff]
    %v235 = vld [vmem:[#allocation2 + $0xa8] sm:$0xff]
    %v236 = vld [vmem:[#allocation2 + $0xb0] sm:$0xff]
    %v237 = vld [vmem:[#allocation2 + $0xb8] sm:$0xff]
    %v238 = vld [vmem:[#allocation2 + $0xc0] sm:$0xff]
    %v239 = vld [vmem:[#allocation2 + $0xc8] sm:$0xff]
    %v240 = vld [vmem:[#allocation2 + $0xd0] sm:$0xff]
    %v241 = vld [vmem:[#allocation2 + $0xd8] sm:$0xff]
    %v242 = vld [vmem:[#allocation2 + $0xe0] sm:$0xff]
    %v243 = vld [vmem:[#allocation2 + $0xe8] sm:$0xff]
    %v244 = vld [vmem:[#allocation2 + $0xf0] sm:$0xff]
    %v245 = vld [vmem:[#allocation2 + $0xf8] sm:$0xff]
    %v246 = vld [vmem:[#allocation2 + $0x100] sm:$0xff]
    %v247 = vld [vmem:[#allocation2 + $0x108] sm:$0xff]
    %v248 = vld [vmem:[#allocation2 + $0x110] sm:$0xff]
    %v249 = vld [vmem:[#allocation2 + $0x118] sm:$0xff]
    %v250 = vld [vmem:[#allocation2 + $0x120] sm:$0xff]
    %v251 = vld [vmem:[#allocation2 + $0x128] sm:$0xff]
    %v252 = vld [vmem:[#allocation2 + $0x130] sm:$0xff]
    %v253 = vld [vmem:[#allocation2 + $0x138] sm:$0xff]
    %v254 = vld [vmem:[#allocation2 + $0x140] sm:$0xff]
    %v255 = vld [vmem:[#allocation2 + $0x148] sm:$0xff]
    %v256 = vld [vmem:[#allocation2 + $0x150] sm:$0xff]
    %v257 = vld [vmem:[#allocation2 + $0x158] sm:$0xff]
    %v258 = vld [vmem:[#allocation2 + $0x160] sm:$0xff]
    %v259 = vld [vmem:[#allocation2 + $0x168] sm:$0xff]
    %v260 = vld [vmem:[#allocation2 + $0x170] sm:$0xff]
    %v261 = vld [vmem:[#allocation2 + $0x178] sm:$0xff]
    %v262 = vld [vmem:[#allocation2 + $0x180] sm:$0xff]
    %v263 = vld [vmem:[#allocation2 + $0x188] sm:$0xff]
    %v264 = vld [vmem:[#allocation2 + $0x190] sm:$0xff]
    %v265 = vld [vmem:[#allocation2 + $0x198] sm:$0xff]
    %v266 = vld [vmem:[#allocation2 + $0x1a0] sm:$0xff]
    %v267 = vld [vmem:[#allocation2 + $0x1a8] sm:$0xff]
    %v268 = vld [vmem:[#allocation2 + $0x1b0] sm:$0xff]
    %v269 = vld [vmem:[#allocation2 + $0x1b8] sm:$0xff]
    %v270 = vld [vmem:[#allocation2 + $0x1c0] sm:$0xff]
    %v271 = vld [vmem:[#allocation2 + $0x1c8] sm:$0xff]
    %v272 = vld [vmem:[#allocation2 + $0x1d0] sm:$0xff]
    %v273 = vld [vmem:[#allocation2 + $0x1d8] sm:$0xff]
    %v274 = vld [vmem:[#allocation2 + $0x1e0] sm:$0xff]
    %v275 = vld [vmem:[#allocation2 + $0x1e8] sm:$0xff]
    %v276 = vld [vmem:[#allocation2 + $0x1f0] sm:$0xff]
    %v277 = vld [vmem:[#allocation2 + $0x1f8] sm:$0xff]
    %v278 = vld [vmem:[%s4] sm:$0x3]
    %v280 = vlaneseq
    %v281 = vshrl.u32 %v280, 7
    %v282 = vsub.s32 0, %v281
    %v283 = vrot.slane %v278, %v282
    %v284 = vlaneseq
    %v285 = vshrl.u32 %v284, 7
    %v286 = vsub.s32 1, %v285
    %v287 = vrot.slane %v278, %v286
    %v354 = vunpack.c.l.b16 %v214
    %v355 = vunpack.c.h.b16 %v214
    %v356 = vunpack.c.l.b16 %v215
    %v357 = vunpack.c.h.b16 %v215
    %v358 = vunpack.c.l.b16 %v216
    %v359 = vunpack.c.h.b16 %v216
    %v360 = vunpack.c.l.b16 %v217
    %v361 = vunpack.c.h.b16 %v217
    %v362 = vunpack.c.l.b16 %v218
    %v363 = vunpack.c.h.b16 %v218
    %v364 = vunpack.c.l.b16 %v219
    %v365 = vunpack.c.h.b16 %v219
    %v366 = vunpack.c.l.b16 %v220
    %v367 = vunpack.c.h.b16 %v220
    %v368 = vunpack.c.l.b16 %v221
    %v369 = vunpack.c.h.b16 %v221
    %v370 = vunpack.c.l.b16 %v222
    %v371 = vunpack.c.h.b16 %v222
    %v372 = vunpack.c.l.b16 %v223
    %v373 = vunpack.c.h.b16 %v223
    %v374 = vunpack.c.l.b16 %v224
    %v375 = vunpack.c.h.b16 %v224
    %v376 = vunpack.c.l.b16 %v225
    %v377 = vunpack.c.h.b16 %v225
    %v378 = vunpack.c.l.b16 %v226
    %v379 = vunpack.c.h.b16 %v226
    %v380 = vunpack.c.l.b16 %v227
    %v381 = vunpack.c.h.b16 %v227
    %v382 = vunpack.c.l.b16 %v228
    %v383 = vunpack.c.h.b16 %v228
    %v384 = vunpack.c.l.b16 %v229
    %v385 = vunpack.c.h.b16 %v229
    %v386 = vunpack.c.l.b16 %v230
    %v387 = vunpack.c.h.b16 %v230
    %v388 = vunpack.c.l.b16 %v231
    %v389 = vunpack.c.h.b16 %v231
    %v390 = vunpack.c.l.b16 %v232
    %v391 = vunpack.c.h.b16 %v232
    %v392 = vunpack.c.l.b16 %v233
    %v393 = vunpack.c.h.b16 %v233
    %v394 = vunpack.c.l.b16 %v234
    %v395 = vunpack.c.h.b16 %v234
    %v396 = vunpack.c.l.b16 %v235
    %v397 = vunpack.c.h.b16 %v235
    %v398 = vunpack.c.l.b16 %v236
    %v399 = vunpack.c.h.b16 %v236
    %v400 = vunpack.c.l.b16 %v237
    %v401 = vunpack.c.h.b16 %v237
    %v402 = vunpack.c.l.b16 %v238
    %v403 = vunpack.c.h.b16 %v238
    %v404 = vunpack.c.l.b16 %v239
    %v405 = vunpack.c.h.b16 %v239
    %v406 = vunpack.c.l.b16 %v240
    %v407 = vunpack.c.h.b16 %v240
    %v408 = vunpack.c.l.b16 %v241
    %v409 = vunpack.c.h.b16 %v241
    %v410 = vunpack.c.l.b16 %v242
    %v411 = vunpack.c.h.b16 %v242
    %v412 = vunpack.c.l.b16 %v243
    %v413 = vunpack.c.h.b16 %v243
    %v414 = vunpack.c.l.b16 %v244
    %v415 = vunpack.c.h.b16 %v244
    %v416 = vunpack.c.l.b16 %v245
    %v417 = vunpack.c.h.b16 %v245
    %v418 = vunpack.c.l.b16 %v246
    %v419 = vunpack.c.h.b16 %v246
    %v420 = vunpack.c.l.b16 %v247
    %v421 = vunpack.c.h.b16 %v247
    %v422 = vunpack.c.l.b16 %v248
    %v423 = vunpack.c.h.b16 %v248
    %v424 = vunpack.c.l.b16 %v249
    %v425 = vunpack.c.h.b16 %v249
    %v426 = vunpack.c.l.b16 %v250
    %v427 = vunpack.c.h.b16 %v250
    %v428 = vunpack.c.l.b16 %v251
    %v429 = vunpack.c.h.b16 %v251
    %v430 = vunpack.c.l.b16 %v252
    %v431 = vunpack.c.h.b16 %v252
    %v432 = vunpack.c.l.b16 %v253
    %v433 = vunpack.c.h.b16 %v253
    %v434 = vunpack.c.l.b16 %v254
    %v435 = vunpack.c.h.b16 %v254
    %v436 = vunpack.c.l.b16 %v255
    %v437 = vunpack.c.h.b16 %v255
    %v438 = vunpack.c.l.b16 %v256
    %v439 = vunpack.c.h.b16 %v256
    %v440 = vunpack.c.l.b16 %v257
    %v441 = vunpack.c.h.b16 %v257
    %v442 = vunpack.c.l.b16 %v258
    %v443 = vunpack.c.h.b16 %v258
    %v444 = vunpack.c.l.b16 %v259
    %v445 = vunpack.c.h.b16 %v259
    %v446 = vunpack.c.l.b16 %v260
    %v447 = vunpack.c.h.b16 %v260
    %v448 = vunpack.c.l.b16 %v261
    %v449 = vunpack.c.h.b16 %v261
    %v450 = vunpack.c.l.b16 %v262
    %v451 = vunpack.c.h.b16 %v262
    %v452 = vunpack.c.l.b16 %v263
    %v453 = vunpack.c.h.b16 %v263
    %v454 = vunpack.c.l.b16 %v264
    %v455 = vunpack.c.h.b16 %v264
    %v456 = vunpack.c.l.b16 %v265
    %v457 = vunpack.c.h.b16 %v265
    %v458 = vunpack.c.l.b16 %v266
    %v459 = vunpack.c.h.b16 %v266
    %v460 = vunpack.c.l.b16 %v267
    %v461 = vunpack.c.h.b16 %v267
    %v462 = vunpack.c.l.b16 %v268
    %v463 = vunpack.c.h.b16 %v268
    %v464 = vunpack.c.l.b16 %v269
    %v465 = vunpack.c.h.b16 %v269
    %v466 = vunpack.c.l.b16 %v270
    %v467 = vunpack.c.h.b16 %v270
    %v468 = vunpack.c.l.b16 %v271
    %v469 = vunpack.c.h.b16 %v271
    %v470 = vunpack.c.l.b16 %v272
    %v471 = vunpack.c.h.b16 %v272
    %v472 = vunpack.c.l.b16 %v273
    %v473 = vunpack.c.h.b16 %v273
    %v474 = vunpack.c.l.b16 %v274
    %v475 = vunpack.c.h.b16 %v274
    %v476 = vunpack.c.l.b16 %v275
    %v477 = vunpack.c.h.b16 %v275
    %v478 = vunpack.c.l.b16 %v276
    %v479 = vunpack.c.h.b16 %v276
    %v480 = vunpack.c.l.b16 %v277
    %v481 = vunpack.c.h.b16 %v277
    %v482 = vpack.c.b16 %v356, %v354
    %v483 = vpack.c.b16 %v357, %v355
    %v484 = vpack.c.b16 %v360, %v358
    %v485 = vpack.c.b16 %v361, %v359
    %v486 = vpack.c.b16 %v364, %v362
    %v487 = vpack.c.b16 %v365, %v363
    %v488 = vpack.c.b16 %v368, %v366
    %v489 = vpack.c.b16 %v369, %v367
    %v490 = vpack.c.b16 %v372, %v370
    %v491 = vpack.c.b16 %v373, %v371
    %v492 = vpack.c.b16 %v376, %v374
    %v493 = vpack.c.b16 %v377, %v375
    %v494 = vpack.c.b16 %v380, %v378
    %v495 = vpack.c.b16 %v381, %v379
    %v496 = vpack.c.b16 %v384, %v382
    %v497 = vpack.c.b16 %v385, %v383
    %v498 = vpack.c.b16 %v388, %v386
    %v499 = vpack.c.b16 %v389, %v387
    %v500 = vpack.c.b16 %v392, %v390
    %v501 = vpack.c.b16 %v393, %v391
    %v502 = vpack.c.b16 %v396, %v394
    %v503 = vpack.c.b16 %v397, %v395
    %v504 = vpack.c.b16 %v400, %v398
    %v505 = vpack.c.b16 %v401, %v399
    %v506 = vpack.c.b16 %v404, %v402
    %v507 = vpack.c.b16 %v405, %v403
    %v508 = vpack.c.b16 %v408, %v406
    %v509 = vpack.c.b16 %v409, %v407
    %v510 = vpack.c.b16 %v412, %v410
    %v511 = vpack.c.b16 %v413, %v411
    %v512 = vpack.c.b16 %v416, %v414
    %v513 = vpack.c.b16 %v417, %v415
    %v514 = vpack.c.b16 %v420, %v418
    %v515 = vpack.c.b16 %v421, %v419
    %v516 = vpack.c.b16 %v424, %v422
    %v517 = vpack.c.b16 %v425, %v423
    %v518 = vpack.c.b16 %v428, %v426
    %v519 = vpack.c.b16 %v429, %v427
    %v520 = vpack.c.b16 %v432, %v430
    %v521 = vpack.c.b16 %v433, %v431
    %v522 = vpack.c.b16 %v436, %v434
    %v523 = vpack.c.b16 %v437, %v435
    %v524 = vpack.c.b16 %v440, %v438
    %v525 = vpack.c.b16 %v441, %v439
    %v526 = vpack.c.b16 %v444, %v442
    %v527 = vpack.c.b16 %v445, %v443
    %v528 = vpack.c.b16 %v448, %v446
    %v529 = vpack.c.b16 %v449, %v447
    %v530 = vpack.c.b16 %v452, %v450
    %v531 = vpack.c.b16 %v453, %v451
    %v532 = vpack.c.b16 %v456, %v454
    %v533 = vpack.c.b16 %v457, %v455
    %v534 = vpack.c.b16 %v460, %v458
    %v535 = vpack.c.b16 %v461, %v459
    %v536 = vpack.c.b16 %v464, %v462
    %v537 = vpack.c.b16 %v465, %v463
    %v538 = vpack.c.b16 %v468, %v466
    %v539 = vpack.c.b16 %v469, %v467
    %v540 = vpack.c.b16 %v472, %v470
    %v541 = vpack.c.b16 %v473, %v471
    %v542 = vpack.c.b16 %v476, %v474
    %v543 = vpack.c.b16 %v477, %v475
    %v544 = vpack.c.b16 %v480, %v478
    %v545 = vpack.c.b16 %v481, %v479
    %610 = vmatprep.subr.bf16.mxu0 %v483
    %611 = vmatpush1.bf16.msra.mxu0 %v482
    %612 = vmatprep.subr.bf16.mxu0 %v485
    %613 = vmatpush1.bf16.msra.mxu0 %v484
    %614 = vmatprep.subr.bf16.mxu0 %v487
    %615 = vmatpush1.bf16.msra.mxu0 %v486
    %616 = vmatprep.subr.bf16.mxu0 %v489
    %617 = vmatpush1.bf16.msra.mxu0 %v488
    %618 = vmatprep.subr.bf16.mxu0 %v491
    %619 = vmatpush1.bf16.msra.mxu0 %v490
    %620 = vmatprep.subr.bf16.mxu0 %v493
    %621 = vmatpush1.bf16.msra.mxu0 %v492
    %622 = vmatprep.subr.bf16.mxu0 %v495
    %623 = vmatpush1.bf16.msra.mxu0 %v494
    %624 = vmatprep.subr.bf16.mxu0 %v497
    %625 = vmatpush1.bf16.msra.mxu0 %v496
    %626 = vmatprep.subr.bf16.mxu0 %v499
    %627 = vmatpush1.bf16.msra.mxu0 %v498
    %628 = vmatprep.subr.bf16.mxu0 %v501
    %629 = vmatpush1.bf16.msra.mxu0 %v500
    %630 = vmatprep.subr.bf16.mxu0 %v503
    %631 = vmatpush1.bf16.msra.mxu0 %v502
    %632 = vmatprep.subr.bf16.mxu0 %v505
    %633 = vmatpush1.bf16.msra.mxu0 %v504
    %634 = vmatprep.subr.bf16.mxu0 %v507
    %635 = vmatpush1.bf16.msra.mxu0 %v506
    %636 = vmatprep.subr.bf16.mxu0 %v509
    %637 = vmatpush1.bf16.msra.mxu0 %v508
    %638 = vmatprep.subr.bf16.mxu0 %v511
    %639 = vmatpush1.bf16.msra.mxu0 %v510
    %640 = vmatprep.subr.bf16.mxu0 %v513
    %641 = vmatpush1.bf16.msra.mxu0 %v512
    %642 = vmatprep.mubr.bf16.mxu0 %v211
    %643 = vmatmul.mubr.bf16.gmra.mrb[0].mxu0 %v210
    %v644 = vpop.f32.mrb[0].mxu0
    %v645 = vadd.f32 %v283, %v644
    %v646 = vpop.f32.mrb[0].mxu0
    %v647 = vadd.f32 %v287, %v646
    %v648 = vpop.f32.mrb[0].mxu0
    %v649 = vpop.f32.mrb[0].mxu0
    %650 = vdwg.mxu0
    %651 = vmatprep.subr.bf16.mxu0 %v515
    %652 = vmatpush1.bf16.msra.mxu0 %v514
    %653 = vmatprep.subr.bf16.mxu0 %v517
    %654 = vmatpush1.bf16.msra.mxu0 %v516
    %655 = vmatprep.subr.bf16.mxu0 %v519
    %656 = vmatpush1.bf16.msra.mxu0 %v518
    %657 = vmatprep.subr.bf16.mxu0 %v521
    %658 = vmatpush1.bf16.msra.mxu0 %v520
    %659 = vmatprep.subr.bf16.mxu0 %v523
    %660 = vmatpush1.bf16.msra.mxu0 %v522
    %661 = vmatprep.subr.bf16.mxu0 %v525
    %662 = vmatpush1.bf16.msra.mxu0 %v524
    %663 = vmatprep.subr.bf16.mxu0 %v527
    %664 = vmatpush1.bf16.msra.mxu0 %v526
    %665 = vmatprep.subr.bf16.mxu0 %v529
    %666 = vmatpush1.bf16.msra.mxu0 %v528
    %667 = vmatprep.subr.bf16.mxu0 %v531
    %668 = vmatpush1.bf16.msra.mxu0 %v530
    %669 = vmatprep.subr.bf16.mxu0 %v533
    %670 = vmatpush1.bf16.msra.mxu0 %v532
    %671 = vmatprep.subr.bf16.mxu0 %v535
    %672 = vmatpush1.bf16.msra.mxu0 %v534
    %673 = vmatprep.subr.bf16.mxu0 %v537
    %674 = vmatpush1.bf16.msra.mxu0 %v536
    %675 = vmatprep.subr.bf16.mxu0 %v539
    %676 = vmatpush1.bf16.msra.mxu0 %v538
    %677 = vmatprep.subr.bf16.mxu0 %v541
    %678 = vmatpush1.bf16.msra.mxu0 %v540
    %679 = vmatprep.subr.bf16.mxu0 %v543
    %680 = vmatpush1.bf16.msra.mxu0 %v542
    %681 = vmatprep.subr.bf16.mxu0 %v545
    %682 = vmatpush1.bf16.msra.mxu0 %v544
    %683 = vmatprep.mubr.bf16.mxu0 %v213
    %684 = vmatmul.mubr.bf16.gmra.mrb[0].mxu0 %v212
    %v685 = vpop.f32.mrb[0].mxu0
    %v686 = vadd.f32 %v645, %v685
    %v687 = vpop.f32.mrb[0].mxu0
    %v688 = vadd.f32 %v647, %v687
    %v689 = vpop.f32.mrb[0].mxu0
    %v690 = vpop.f32.mrb[0].mxu0
    %691 = vdwg.mxu0
    %v692 = vmax.f32 %v686, 0.0
    %v693 = vmax.f32 %v688, 0.0
    %v694 = vpack.c.bf16 %v692, %v692
    %v695 = vpack.c.bf16 %v693, %v693
    %v696 = vld [vmem:[%s5] sm:$0xf]
    %v697 = vld [vmem:[%s5 + $0x4] sm:$0xf]
    %v698 = vld [vmem:[%s5 + $0x8] sm:$0xf]
    %v699 = vld [vmem:[%s5 + $0xc] sm:$0xf]
    %v700 = vld [vmem:[%s5 + $0x10] sm:$0xf]
    %v701 = vld [vmem:[%s5 + $0x14] sm:$0xf]
    %v702 = vld [vmem:[%s5 + $0x18] sm:$0xf]
    %v703 = vld [vmem:[%s5 + $0x1c] sm:$0xf]
    %v704 = vld [vmem:[%s5 + $0x20] sm:$0xf]
    %v705 = vld [vmem:[%s5 + $0x24] sm:$0xf]
    %v706 = vld [vmem:[%s5 + $0x28] sm:$0xf]
    %v707 = vld [vmem:[%s5 + $0x2c] sm:$0xf]
    %v708 = vld [vmem:[%s5 + $0x30] sm:$0xf]
    %v709 = vld [vmem:[%s5 + $0x34] sm:$0xf]
    %v710 = vld [vmem:[%s5 + $0x38] sm:$0xf]
    %v711 = vld [vmem:[%s5 + $0x3c] sm:$0xf]
    %v712 = vld [vmem:[%s5 + $0x40] sm:$0xf]
    %v713 = vld [vmem:[%s5 + $0x44] sm:$0xf]
    %v714 = vld [vmem:[%s5 + $0x48] sm:$0xf]
    %v715 = vld [vmem:[%s5 + $0x4c] sm:$0xf]
    %v716 = vld [vmem:[%s5 + $0x50] sm:$0xf]
    %v717 = vld [vmem:[%s5 + $0x54] sm:$0xf]
    %v718 = vld [vmem:[%s5 + $0x58] sm:$0xf]
    %v719 = vld [vmem:[%s5 + $0x5c] sm:$0xf]
    %v720 = vld [vmem:[%s5 + $0x60] sm:$0xf]
    %v721 = vld [vmem:[%s5 + $0x64] sm:$0xf]
    %v722 = vld [vmem:[%s5 + $0x68] sm:$0xf]
    %v723 = vld [vmem:[%s5 + $0x6c] sm:$0xf]
    %v724 = vld [vmem:[%s5 + $0x70] sm:$0xf]
    %v725 = vld [vmem:[%s5 + $0x74] sm:$0xf]
    %v726 = vld [vmem:[%s5 + $0x78] sm:$0xf]
    %v727 = vld [vmem:[%s5 + $0x7c] sm:$0xf]
    %v728 = vld [vmem:[%s6] sm:$0x1]
    %v730 = vlaneseq
    %v731 = vshrl.u32 %v730, 7
    %v732 = vsub.s32 0, %v731
    %v733 = vrot.slane %v728, %v732
    %v767 = vunpack.c.l.b16 %v696
    %v768 = vunpack.c.l.b16 %v697
    %v769 = vunpack.c.l.b16 %v698
    %v770 = vunpack.c.l.b16 %v699
    %v771 = vunpack.c.l.b16 %v700
    %v772 = vunpack.c.l.b16 %v701
    %v773 = vunpack.c.l.b16 %v702
    %v774 = vunpack.c.l.b16 %v703
    %v775 = vunpack.c.l.b16 %v704
    %v776 = vunpack.c.l.b16 %v705
    %v777 = vunpack.c.l.b16 %v706
    %v778 = vunpack.c.l.b16 %v707
    %v779 = vunpack.c.l.b16 %v708
    %v780 = vunpack.c.l.b16 %v709
    %v781 = vunpack.c.l.b16 %v710
    %v782 = vunpack.c.l.b16 %v711
    %v783 = vunpack.c.l.b16 %v712
    %v784 = vunpack.c.l.b16 %v713
    %v785 = vunpack.c.l.b16 %v714
    %v786 = vunpack.c.l.b16 %v715
    %v787 = vunpack.c.l.b16 %v716
    %v788 = vunpack.c.l.b16 %v717
    %v789 = vunpack.c.l.b16 %v718
    %v790 = vunpack.c.l.b16 %v719
    %v791 = vunpack.c.l.b16 %v720
    %v792 = vunpack.c.l.b16 %v721
    %v793 = vunpack.c.l.b16 %v722
    %v794 = vunpack.c.l.b16 %v723
    %v795 = vunpack.c.l.b16 %v724
    %v796 = vunpack.c.l.b16 %v725
    %v797 = vunpack.c.l.b16 %v726
    %v798 = vunpack.c.l.b16 %v727
    %v799 = vpack.c.b16 %v768, %v767
    %v800 = vpack.c.b16 %v770, %v769
    %v801 = vpack.c.b16 %v772, %v771
    %v802 = vpack.c.b16 %v774, %v773
    %v803 = vpack.c.b16 %v776, %v775
    %v804 = vpack.c.b16 %v778, %v777
    %v805 = vpack.c.b16 %v780, %v779
    %v806 = vpack.c.b16 %v782, %v781
    %v807 = vpack.c.b16 %v784, %v783
    %v808 = vpack.c.b16 %v786, %v785
    %v809 = vpack.c.b16 %v788, %v787
    %v810 = vpack.c.b16 %v790, %v789
    %v811 = vpack.c.b16 %v792, %v791
    %v812 = vpack.c.b16 %v794, %v793
    %v813 = vpack.c.b16 %v796, %v795
    %v814 = vpack.c.b16 %v798, %v797
    %831 = vmatprep.subr.bf16.mxu0 0
    %832 = vmatpush1.bf16.msra.mxu0 %v799
    %833 = vmatprep.subr.bf16.mxu0 0
    %834 = vmatpush1.bf16.msra.mxu0 %v800
    %835 = vmatprep.subr.bf16.mxu0 0
    %836 = vmatpush1.bf16.msra.mxu0 %v801
    %837 = vmatprep.subr.bf16.mxu0 0
    %838 = vmatpush1.bf16.msra.mxu0 %v802
    %839 = vmatprep.subr.bf16.mxu0 0
    %840 = vmatpush1.bf16.msra.mxu0 %v803
    %841 = vmatprep.subr.bf16.mxu0 0
    %842 = vmatpush1.bf16.msra.mxu0 %v804
    %843 = vmatprep.subr.bf16.mxu0 0
    %844 = vmatpush1.bf16.msra.mxu0 %v805
    %845 = vmatprep.subr.bf16.mxu0 0
    %846 = vmatpush1.bf16.msra.mxu0 %v806
    %847 = vmatprep.subr.bf16.mxu0 0
    %848 = vmatpush1.bf16.msra.mxu0 %v807
    %849 = vmatprep.subr.bf16.mxu0 0
    %850 = vmatpush1.bf16.msra.mxu0 %v808
    %851 = vmatprep.subr.bf16.mxu0 0
    %852 = vmatpush1.bf16.msra.mxu0 %v809
    %853 = vmatprep.subr.bf16.mxu0 0
    %854 = vmatpush1.bf16.msra.mxu0 %v810
    %855 = vmatprep.subr.bf16.mxu0 0
    %856 = vmatpush1.bf16.msra.mxu0 %v811
    %857 = vmatprep.subr.bf16.mxu0 0
    %858 = vmatpush1.bf16.msra.mxu0 %v812
    %859 = vmatprep.subr.bf16.mxu0 0
    %860 = vmatpush1.bf16.msra.mxu0 %v813
    %861 = vmatprep.subr.bf16.mxu0 0
    %862 = vmatpush1.bf16.msra.mxu0 %v814
    %863 = vmatprep.mubr.bf16.mxu0 %v695
    %864 = vmatmul.mubr.bf16.gmra.mrb[0].mxu0 %v694
    %v865 = vpop.f32.mrb[0].mxu0
    %v866 = vadd.f32 %v733, %v865
    %v867 = vpop.f32.mrb[0].mxu0
    %v868 = vpop.f32.mrb[0].mxu0
    %v869 = vpop.f32.mrb[0].mxu0
    %870 = vdwg.mxu0
    %v871 = vmax.f32 %v866, 0.0
    %v872 = vpack.c.bf16 %v871, %v871
    %v873 = vld [vmem:[%s7] sm:$0xf]
    %v874 = vld [vmem:[%s7 + $0x4] sm:$0xf]
    %v875 = vld [vmem:[%s7 + $0x8] sm:$0xf]
    %v876 = vld [vmem:[%s7 + $0xc] sm:$0xf]
    %v877 = vld [vmem:[%s7 + $0x10] sm:$0xf]
    %v878 = vld [vmem:[%s7 + $0x14] sm:$0xf]
    %v879 = vld [vmem:[%s7 + $0x18] sm:$0xf]
    %v880 = vld [vmem:[%s7 + $0x1c] sm:$0xf]
    %v881 = vld [vmem:[%s8] sm:$0x1]
    %v883 = vlaneseq
    %v884 = vshrl.u32 %v883, 7
    %v885 = vsub.s32 0, %v884
    %v886 = vrot.slane %v881, %v885
    %v896 = vunpack.c.l.b16 %v873
    %v897 = vunpack.c.l.b16 %v874
    %v898 = vunpack.c.l.b16 %v875
    %v899 = vunpack.c.l.b16 %v876
    %v900 = vunpack.c.l.b16 %v877
    %v901 = vunpack.c.l.b16 %v878
    %v902 = vunpack.c.l.b16 %v879
    %v903 = vunpack.c.l.b16 %v880
    %v904 = vpack.c.b16 %v897, %v896
    %v905 = vpack.c.b16 %v899, %v898
    %v906 = vpack.c.b16 %v901, %v900
    %v907 = vpack.c.b16 %v903, %v902
    %vm912 = vcmask 523264
    %v914 = vsel %vm912, %v872, 0
    %916 = vmatprep.subr.bf16.mxu0 0
    %917 = vmatpush1.bf16.msra.mxu0 %v904
    %918 = vmatprep.subr.bf16.mxu0 0
    %919 = vmatpush1.bf16.msra.mxu0 %v905
    %920 = vmatprep.subr.bf16.mxu0 0
    %921 = vmatpush1.bf16.msra.mxu0 %v906
    %922 = vmatprep.subr.bf16.mxu0 0
    %923 = vmatpush1.bf16.msra.mxu0 %v907
    %924 = vmatprep.subr.bf16.mxu0 0
    %925 = vmatpush1.bf16.msra.mxu0 0
    %926 = vmatprep.subr.bf16.mxu0 0
    %927 = vmatpush1.bf16.msra.mxu0 0
    %928 = vmatprep.subr.bf16.mxu0 0
    %929 = vmatpush1.bf16.msra.mxu0 0
    %930 = vmatprep.subr.bf16.mxu0 0
    %931 = vmatpush1.bf16.msra.mxu0 0
    %932 = vmatprep.subr.bf16.mxu0 0
    %933 = vmatpush1.bf16.msra.mxu0 0
    %934 = vmatprep.subr.bf16.mxu0 0
    %935 = vmatpush1.bf16.msra.mxu0 0
    %936 = vmatprep.subr.bf16.mxu0 0
    %937 = vmatpush1.bf16.msra.mxu0 0
    %938 = vmatprep.subr.bf16.mxu0 0
    %939 = vmatpush1.bf16.msra.mxu0 0
    %940 = vmatprep.subr.bf16.mxu0 0
    %941 = vmatpush1.bf16.msra.mxu0 0
    %942 = vmatprep.subr.bf16.mxu0 0
    %943 = vmatpush1.bf16.msra.mxu0 0
    %944 = vmatprep.subr.bf16.mxu0 0
    %945 = vmatpush1.bf16.msra.mxu0 0
    %946 = vmatprep.subr.bf16.mxu0 0
    %947 = vmatpush1.bf16.msra.mxu0 0
    %948 = vmatprep.mubr.bf16.mxu0 0
    %949 = vmatmul.mubr.bf16.gmra.mrb[0].mxu0 %v914
    %v950 = vpop.f32.mrb[0].mxu0
    %v951 = vadd.f32 %v886, %v950
    %v952 = vpop.f32.mrb[0].mxu0
    %v953 = vpop.f32.mrb[0].mxu0
    %v954 = vpop.f32.mrb[0].mxu0
    %955 = vdwg.mxu0
    %vm956 = vcmask 130048
    %957 = vst.msk [vmem:[#allocation5] sm:$0xff] %vm956, %v951
    // Predicated region
    $region42: #{tpu_custom_call.1} parent=1 // pred_check
      _
    $region43: #{tpu_custom_call.1} parent=1 // pred_check_branch
      %959 = sbr.rel (0) target = $region45
    $region44: #{tpu_custom_call.1} parent=1 // pred_region
      %s961 = ssub.s32 128, 128
      %962 = vsyncadd [#allocation4], %s961
      %s964 = sshll.u32 [#allocation5], 4
      %s965 = int_to_ptr.vmem [resolvable:$true] %s964
      %967 = dma.vmem_to_hbm [thread:$0]  %s965, 128, %s9, [#allocation4]
    $region45: #{tpu_custom_call.1} parent=1 // pred_fallthru
      _
    // Predicated region
    $region46: #{tpu_custom_call.1} parent=1 // pred_check
      _
    $region47: #{tpu_custom_call.1} parent=1 // pred_check_branch
      %969 = sbr.rel (0) target = $region49
    $region48: #{tpu_custom_call.1} parent=1 // pred_region
      %970 = dma.done [#allocation4], 128
    $region49: #{tpu_custom_call.1} parent=1 // pred_fallthru
      _
    %971 = vsyncpa [#allocation3], 1
    %972 = vsyncpa [#allocation4], 1

</llo_original>
